<compile_context>
chip_gen: v5e
topology: v5e:2x2
jax: 0.10.0
libtpu: 0.0.40
codegen_flags: <defaults>
</compile_context>

<pallas_src>
import functools

import numpy as np
import jax
import jax.numpy as jnp
from jax import lax
from jax.experimental import pallas as pl
from jax.experimental.pallas import tpu as pltpu

PI = 3.14159265
REPLUSIVE_INIT = 2147483648  # 1 << 31 (same constant as the torch module)


def _round_up(x, m):
    return ((int(x) + m - 1) // m) * m


def _vmem_capacity_bytes():
    try:
        return int(pltpu.get_tpu_info().vmem_capacity_bytes)
    except Exception:
        return 64 * 1024 * 1024  # conservative (v7x-sized) fallback


def _vmem_limit_bytes():
    # never exceed 3/4 of physical VMEM; generous on v5e/v6e (128 MiB), safe on v7x (64 MiB)
    return int(min(_vmem_capacity_bytes() * 3 // 4, 100 * 1024 * 1024))


def _pick_tile_rows(total_rows, row_bytes, n_streams, granule):
    """Largest row tile (multiple of `granule`) whose double-buffered resident
    footprint across `n_streams` stays within a generation-aware VMEM budget.
    Also splits the grid into >=2 steps when possible (v7x has 2 TensorCores;
    the extra ~0.35us/step is negligible on 1-TC chips)."""
    vmem_cap = _vmem_capacity_bytes()
    resident_budget = min(vmem_cap // 2, 48 * 1024 * 1024)
    per_tile = max(resident_budget // max(2 * n_streams, 1), granule * row_bytes)
    rows = max(granule, (per_tile // max(row_bytes, 1)) // granule * granule)
    rows = int(min(rows, 1024))
    total_pad = _round_up(max(total_rows, 1), granule)
    rows = min(rows, total_pad)
    if total_pad > granule:
        half = _round_up((total_pad + 1) // 2, granule)
        rows = min(rows, half)
    return int(rows)


# ---------------------------------------------------------------------------
# Pallas kernel 1: per-pixel "find_parents"
#   - row-tiled (grid over row tiles, "parallel" semantics)
#   - vertical neighbours via in-tile sublane rolls + a 2-row halo input per
#     tile (no full pre-shifted copies -> ~2 HBM passes total)
#   - horizontal neighbours via XLU lane rolls
#   - dh/dw via a compare tree; bin quantization uses reciprocal multiplies
#   - single packed output: pidx >= 0 -> parent index nh*W+nw,
#                           pidx <  0 -> root, own index = -pidx-1
# ---------------------------------------------------------------------------
def _find_parents_kernel(ang_ref, halo_ref, pidx_ref, *,
                         height, width, tile_h, theta_a):
    ang = ang_ref[...]
    shape = ang.shape
    w_pad = shape[1]

    halo = halo_ref[...]
    below = halo[0:1, :]   # angles[tile_end, :]       -> "up" neighbour of the tile's last row
    above = halo[1:2, :]   # angles[tile_start - 1, :] -> "dn" neighbour of the tile's first row

    # quantize the angle into one of the 8 direction bins (wraps like the
    # reference's direction-table indexing); multiplies instead of divides.
    pos_f = jnp.round((ang + PI / 8.0) * (4.0 / PI))
    pos_f = pos_f - 8.0 * jnp.floor(pos_f * 0.125)
    pos = pos_f.astype(jnp.int32)

    # direction table [(1,0),(1,1),(0,1),(-1,1),(-1,0),(-1,-1),(0,-1),(1,-1)]
    dh = jnp.where((pos <= 1) | (pos == 7), 1,
                   jnp.where((pos >= 3) & (pos <= 5), -1, 0)).astype(jnp.int32)
    dw = jnp.where((pos >= 1) & (pos <= 3), 1,
                   jnp.where((pos >= 5) & (pos <= 7), -1, 0)).astype(jnp.int32)

    ii_loc = lax.broadcasted_iota(jnp.int32, shape, 0)
    # vertical neighbours: in-tile sublane roll, boundary rows fixed from halo.
    up = pltpu.roll(ang, shift=tile_h - 1, axis=0)   # row i -> ang[i + 1]
    dn = pltpu.roll(ang, shift=1, axis=0)            # row i -> ang[i - 1]
    up = jnp.where(ii_loc == tile_h - 1, below, up)
    dn = jnp.where(ii_loc == 0, above, dn)

    # pick the row source, then shift columns with XLU lane rolls.
    row_src = jnp.where(dh == 1, up, jnp.where(dh == -1, dn, ang))
    col_plus = pltpu.roll(row_src, shift=w_pad - 1, axis=1)   # value at column j+1
    col_minus = pltpu.roll(row_src, shift=1, axis=1)          # value at column j-1
    next_ang = jnp.where(dw == 1, col_plus,
                         jnp.where(dw == -1, col_minus, row_src))

    base = pl.program_id(0) * tile_h
    ii = base + ii_loc
    jj = lax.broadcasted_iota(jnp.int32, shape, 1)
    nh = ii + dh
    nw = jj + dw
    oob = (nh >= height) | (nh < 0) | (nw >= width) | (nw < 0)

    adiff = jnp.abs(ang - next_ang)
    adiff = jnp.minimum(adiff, 2.0 * PI - adiff)
    is_root = oob | (adiff > theta_a * PI / 180.0)

    self_idx = ii * width + jj
    pidx_ref[...] = jnp.where(is_root, -self_idx - 1, nh * width + nw)


def find_parents_pallas(angles, theta_a):
    h, w = angles.shape
    w_pad = _round_up(max(w, 1), 128)                 # lane-dense last dim
    # 2 full streams (angle in + packed pidx out); halo stream is negligible.
    tile_h = _pick_tile_rows(h, w_pad * 4, n_streams=2, granule=8)
    h_pad = _round_up(max(h, 1), tile_h)
    num_tiles = h_pad // tile_h

    ang_p = jnp.zeros((h_pad, w_pad), jnp.float32).at[:h, :w].set(
        angles.astype(jnp.float32))

    # per-tile halo rows: [t*8 + 0] = row just below the tile ("up" source for
    # its last row), [t*8 + 1] = row just above the tile ("dn" source for its
    # first row).  Clamped values at the image border are masked by the OOB
    # check inside the kernel, so they never affect the result.
    t = np.arange(num_tiles)
    below_rows = np.minimum((t + 1) * tile_h, h_pad - 1)
    above_rows = np.maximum(t * tile_h - 1, 0)
    halo = jnp.zeros((num_tiles * 8, w_pad), jnp.float32)
    halo = halo.at[0::8, :].set(ang_p[below_rows])
    halo = halo.at[1::8, :].set(ang_p[above_rows])

    kern = functools.partial(_find_parents_kernel, height=h, width=w,
                             tile_h=tile_h, theta_a=float(theta_a))
    pidx = pl.pallas_call(
        kern,
        out_shape=jax.ShapeDtypeStruct((h_pad, w_pad), jnp.int32),
        grid=(num_tiles,),
        in_specs=[pl.BlockSpec((tile_h, w_pad), lambda i: (i, 0)),
                  pl.BlockSpec((8, w_pad), lambda i: (i, 0))],
        out_specs=pl.BlockSpec((tile_h, w_pad), lambda i: (i, 0)),
        compiler_params=pltpu.CompilerParams(
            dimension_semantics=("parallel",),
            vmem_limit_bytes=_vmem_limit_bytes()),
    )(ang_p, halo)
    return pidx[:h, :w]


# ---------------------------------------------------------------------------
# Pallas kernel 2: "classify_edges"
#   - only the active column band j < nums = round((n_sp+31)/32) is streamed
#     (the reference never touches columns >= nums), padded to 128 lanes
#   - row-tiled (32-row granule so the int8 flags output keeps (32,128) tiling)
#   - outputs: averaged-diff band (f32) + int8 flag matrix
#     (0 = untouched, 1 = select, 2 = repulsive); edge_h / edge_w are just
#     masked iotas and are reconstructed on host with np.nonzero.
# ---------------------------------------------------------------------------
def _classify_edges_kernel(diff_ref, pairs_ref, diff_out_ref, flags_ref, *,
                           nums, s_o):
    diff = diff_ref[...]
    pairs = pairs_ref[...]
    jj = lax.broadcasted_iota(jnp.int32, diff.shape, 1)

    nonzero = pairs != 0.0
    # Faithful to the module: only columns j < nums are visited.
    active = nonzero & (jj < nums)
    avg = diff / jnp.where(nonzero, pairs, 1.0)
    thresh = PI - s_o * PI / 180.0
    repulse = active & (avg > thresh)
    select = active & jnp.logical_not(avg > thresh)

    diff_out_ref[...] = jnp.where(active, avg, diff)
    flags_ref[...] = jnp.where(repulse, 2, jnp.where(select, 1, 0)).astype(jnp.int8)


def classify_edges_pallas(bnd_diff, bnd_pairs, s_o, nums):
    n = bnd_diff.shape[0]
    nums = int(nums)
    band_w = _round_up(max(nums, 1), 128)
    # 2 f32 inputs + 1 f32 output + 1 int8 output  ->  ~4 streams (conservative)
    tile_r = _pick_tile_rows(n, band_w * 4, n_streams=4, granule=32)
    r_pad = _round_up(max(n, 1), tile_r)
    ncols = min(band_w, n)

    diff_band = np.zeros((r_pad, band_w), np.float32)
    pairs_band = np.zeros((r_pad, band_w), np.float32)
    diff_band[:n, :ncols] = np.asarray(bnd_diff[:, :ncols], np.float32)
    pairs_band[:n, :ncols] = np.asarray(bnd_pairs[:, :ncols], np.float32)

    kern = functools.partial(_classify_edges_kernel, nums=nums, s_o=float(s_o))
    spec = pl.BlockSpec((tile_r, band_w), lambda i: (i, 0))
    new_diff, flags = pl.pallas_call(
        kern,
        out_shape=(
            jax.ShapeDtypeStruct((r_pad, band_w), jnp.float32),
            jax.ShapeDtypeStruct((r_pad, band_w), jnp.int8),
        ),
        grid=(r_pad // tile_r,),
        in_specs=[spec, spec],
        out_specs=(spec, spec),
        compiler_params=pltpu.CompilerParams(
            dimension_semantics=("parallel",),
            vmem_limit_bytes=_vmem_limit_bytes()),
    )(jnp.asarray(diff_band), jnp.asarray(pairs_band))
    return np.asarray(new_diff)[:n], np.asarray(flags)[:n]


# ---------------------------------------------------------------------------
# Host-side union-find helpers (faithful to the module's FIND/UNION/find).
# TODO(synk): union-find is sequential pointer-chasing with no clean Pallas
#             equivalent; it (and the data-dependent merging glue) stays on host.
# ---------------------------------------------------------------------------
def _FIND(L, index):
    label = int(L[index])
    while label - 1 != index:
        index = label - 1
        label = int(L[index])
    return index


def _UNION(L, a, b):
    a, b = int(a), int(b)
    done = False
    while not done:
        a = _FIND(L, a)
        b = _FIND(L, b)
        if a == b:
            done = True
        else:
            if a > b:
                a, b = b, a
            L[b] = min(int(L[b]), a + 1)
            old = int(L[b])
            if old == b + 1:
                done = True
            b = old - 1
    return L


def _step2(L):
    for i in range(L.size):
        L[i] = _FIND(L, i) + 1


def _find_pc(parent, x):
    x = int(x)
    root = x
    while int(parent[root]) != root:
        root = int(parent[root])
    while int(parent[x]) != root:
        parent[x], x = root, int(parent[x])
    return root


def _bpd_cpu_forward(counts, edge_h, edge_w, bnd_angle_diff, rep_mat, theta_l, theta_s):
    num_edges = edge_h.size
    n_sp, _ = rep_mat.shape
    parent = np.arange(n_sp, dtype=np.int64)
    connect = np.zeros(num_edges, dtype=np.float32)

    def _try_merge(i, large_pass):
        ih = _find_pc(parent, edge_h[i])
        iw = _find_pc(parent, edge_w[i])
        ah = int(counts[ih])
        aw = int(counts[iw])
        min_area = min(ah, aw)
        inter_h = iw // 32
        inter_w = iw % 32
        value = REPLUSIVE_INIT >> inter_w
        not_repulsive = not (int(rep_mat[ih, inter_h]) & value)
        if large_pass:
            if min_area > 250 and not_repulsive:
                if min_area > 1500:
                    thres = PI - theta_l * PI / 180.0
                else:
                    thres = PI - theta_s * PI / 180.0
                if bnd_angle_diff[i] < thres:
                    connect[i] = 1
                    parent[ih] = iw
                    rep_mat[iw, :] |= rep_mat[ih, :]
                    counts[iw] = ah + aw
        else:
            if min_area <= 250 and not_repulsive:
                connect[i] = 1
                parent[ih] = iw
                rep_mat[iw, :] |= rep_mat[ih, :]
                counts[iw] = ah + aw

    for i in range(num_edges):
        _try_merge(i, large_pass=True)
    for i in range(num_edges):
        if connect[i] == 1:
            continue
        _try_merge(i, large_pass=False)
    return connect


# ---------------------------------------------------------------------------
# Full forward pass
# ---------------------------------------------------------------------------
def bpd_forward(input_angles, height, width, theta_a, theta_l, theta_s, S_o):
    H, W = int(height), int(width)
    angles_np = np.asarray(input_angles, dtype=np.float32)

    # --- find_parents (Pallas kernel 1); packed output: sign bit = root flag ---
    pidx_packed = find_parents_pallas(jnp.asarray(input_angles, jnp.float32), theta_a)
    packed_np = np.asarray(pidx_packed).astype(np.int64)
    roots_np = (packed_np < 0).astype(np.float32)
    pidx_np = np.where(packed_np < 0, -packed_np - 1, packed_np)
    ph_np = pidx_np // W
    pw_np = pidx_np % W
    pidx_flat = pidx_np.reshape(-1)

    # --- get_super_BPDs step1 + step2 (host union-find) ---
    L = np.arange(1, H * W + 1, dtype=np.int64)
    for idx in range(H * W):
        _UNION(L, idx, int(pidx_flat[idx]))
    _step2(L)
    super_before = L.reshape(H, W).copy()

    # --- merge_nearby_root_pixels + step2 (iterate root pixels only) ---
    for i, j in np.argwhere(roots_np != 0):
        i, j = int(i), int(j)
        for dh in range(0, min(3, H - 1 - i)):
            for dw in range(-min(3, j), min(3, W - 1 - j)):
                nh, nw = i + dh, j + dw
                if roots_np[nh, nw] == 1:
                    _UNION(L, i * W + j, nh * W + nw)
    _step2(L)
    super_after = L.reshape(H, W).copy()

    uniq, inv, counts = np.unique(L, return_inverse=True, return_counts=True)
    inv = np.reshape(inv, (H, W))
    n_sp = uniq.size

    # --- find_bnd_angle_diff: vectorized boundary-statistics pass (host) ---
    # TODO(synk): the 3-hop parent chase + scatter-add could move on-device to
    #             avoid the (H,W) downloads, but the data-dependent n_sp-sized
    #             scatter has no clean rectangular-tile Pallas expression yet.
    L2d = L.reshape(H, W)
    bnd_diff = np.zeros((n_sp, n_sp), dtype=np.float32)
    bnd_pairs = np.zeros((n_sp, n_sp), dtype=np.float32)
    for dh_k, dw_k in ((0, 1), (1, 0)):
        ih, iw = np.meshgrid(np.arange(H - dh_k), np.arange(W - dw_k), indexing="ij")
        ih = ih.ravel()
        iw = iw.ravel()
        nh = ih + dh_k
        nw = iw + dw_k
        m = L2d[ih, iw] != L2d[nh, nw]
        if not np.any(m):
            continue
        ih, iw, nh, nw = ih[m], iw[m], nh[m], nw[m]
        cp = inv[ih, iw].astype(np.int64)
        npos = inv[nh, nw].astype(np.int64)
        mn = np.minimum(cp, npos)
        mx = np.maximum(cp, npos)
        np.add.at(bnd_pairs, (mn, mx), 1.0)
        ch, cw, th, tw = ih, iw, nh, nw
        for _ in range(3):                      # 3-hop parent chase (vectorized gather)
            ch, cw = ph_np[ch, cw], pw_np[ch, cw]
            th, tw = ph_np[th, tw], pw_np[th, tw]
        ad = np.abs(angles_np[ch, cw] - angles_np[th, tw])
        ad = np.minimum(ad, 2.0 * PI - ad)
        np.add.at(bnd_diff, (mn, mx), ad.astype(np.float32))

    # --- classify_edges (Pallas kernel 2, restricted to the active column band) ---
    nums = int(np.round((n_sp + 32 - 1) / 32.0))
    new_diff_band, flags_band = classify_edges_pallas(bnd_diff, bnd_pairs, S_o, nums)

    rep_mat = np.zeros((n_sp, nums), dtype=np.int64)
    for i, j in np.argwhere(flags_band == 2):
        rep_mat[int(i), int(j) // 32] |= REPLUSIVE_INIT >> (int(j) % 32)

    sel_r, sel_c = np.nonzero(flags_band == 1)   # row-major == masked_select order
    bnd_sel = new_diff_band[sel_r, sel_c]
    eh_sel = sel_r.astype(np.int64)
    ew_sel = sel_c.astype(np.int64)
    order = np.argsort(bnd_sel, kind="stable")
    sorted_diff = bnd_sel[order]
    sorted_eh = eh_sel[order]
    sorted_ew = ew_sel[order]

    # --- bpd_cpu_forward (sequential region merging; host) ---
    connect = _bpd_cpu_forward(counts.copy(), sorted_eh, sorted_ew, sorted_diff,
                               rep_mat.copy(), theta_l, theta_s)

    # --- final step: union connected superpixels, relabel ---
    for i in range(connect.size):
        if connect[i] == 1:
            ih = int(uniq[int(sorted_eh[i])]) - 1
            iw = int(uniq[int(sorted_ew[i])]) - 1
            _UNION(L, ih, iw)
    _step2(L)
    final = L.reshape(H, W).copy()

    # NOTE: the PyTorch module's returned `super_BPDs_after_dilation` aliases the
    # in-place-updated final labels; here we return the pre-final-step snapshot
    # (the algorithmically intended value).
    return (
        jnp.asarray(roots_np, jnp.float32),      # root_points, (H, W) float32
        jnp.asarray(super_before, jnp.int32),    # super_BPDs_before_dilation
        jnp.asarray(super_after, jnp.int32),     # super_BPDs_after_dilation
        jnp.asarray(final, jnp.int32),           # final_result
    )


if __name__ == "__main__":
    key = jax.random.PRNGKey(0)
    H = W = 16
    input_angles = jax.random.uniform(key, (H, W), dtype=jnp.float32,
                                      minval=0.0, maxval=2.0 * PI)
    out = bpd_forward(input_angles, H, W,
                      theta_a=45.0, theta_l=50.0, theta_s=116.0, S_o=60.0)
    jax.block_until_ready(out)
    print("KERNEL_OK")
</pallas_src>

<mosaic_0001>
module attributes {stable_mosaic.version = 11 : i64} {
  func.func @_find_parents_kernel(%arg0: i32, %arg1: memref<8x128xf32, #tpu.memory_space<vmem>>, %arg2: memref<8x128xf32, #tpu.memory_space<vmem>>, %arg3: memref<8x128xi32, #tpu.memory_space<vmem>>) attributes {dimension_semantics = [#tpu.dimension_semantics<parallel>], iteration_bounds = array<i64: 2>, scalar_prefetch = 0 : i64, scratch_operands = 0 : i64, tpu.core_type = #tpu.core_type<tc>, window_params = [{transform_indices = @transform_0, window_bounds = array<i64: 8, 128>}, {transform_indices = @transform_1, window_bounds = array<i64: 8, 128>}, {transform_indices = @transform_2, window_bounds = array<i64: 8, 128>}]} {
    %c0 = arith.constant 0 : index
    %c0_0 = arith.constant 0 : index
    %0 = vector.load %arg1[%c0, %c0_0] : memref<8x128xf32, #tpu.memory_space<vmem>>, vector<8x128xf32>
    %c0_1 = arith.constant 0 : index
    %c0_2 = arith.constant 0 : index
    %1 = vector.load %arg2[%c0_1, %c0_2] : memref<8x128xf32, #tpu.memory_space<vmem>>, vector<8x128xf32>
    %2 = vector.extract_strided_slice %1 {offsets = [0, 0], sizes = [1, 128], strides = [1, 1]} : vector<8x128xf32> to vector<1x128xf32>
    %3 = vector.extract_strided_slice %1 {offsets = [1, 0], sizes = [1, 128], strides = [1, 1]} : vector<8x128xf32> to vector<1x128xf32>
    %cst = arith.constant 0.392699093 : f32
    %4 = vector.broadcast %cst : f32 to vector<8x128xf32>
    %5 = arith.addf %0, %4 : vector<8x128xf32>
    %cst_3 = arith.constant 1.27323949 : f32
    %6 = vector.broadcast %cst_3 : f32 to vector<8x128xf32>
    %7 = arith.mulf %5, %6 : vector<8x128xf32>
    %8 = math.roundeven %7 : vector<8x128xf32>
    %cst_4 = arith.constant 1.250000e-01 : f32
    %9 = vector.broadcast %cst_4 : f32 to vector<8x128xf32>
    %10 = arith.mulf %8, %9 : vector<8x128xf32>
    %11 = math.floor %10 : vector<8x128xf32>
    %cst_5 = arith.constant 8.000000e+00 : f32
    %12 = vector.broadcast %cst_5 : f32 to vector<8x128xf32>
    %13 = arith.mulf %12, %11 : vector<8x128xf32>
    %14 = arith.subf %8, %13 : vector<8x128xf32>
    %15 = arith.fptosi %14 : vector<8x128xf32> to vector<8x128xi32>
    %c1_i32 = arith.constant 1 : i32
    %16 = vector.broadcast %c1_i32 : i32 to vector<8x128xi32>
    %17 = arith.cmpi sle, %15, %16 : vector<8x128xi32>
    %c7_i32 = arith.constant 7 : i32
    %18 = vector.broadcast %c7_i32 : i32 to vector<8x128xi32>
    %19 = arith.cmpi eq, %15, %18 : vector<8x128xi32>
    %20 = arith.ori %17, %19 : vector<8x128xi1>
    %c3_i32 = arith.constant 3 : i32
    %21 = vector.broadcast %c3_i32 : i32 to vector<8x128xi32>
    %22 = arith.cmpi sge, %15, %21 : vector<8x128xi32>
    %c5_i32 = arith.constant 5 : i32
    %23 = vector.broadcast %c5_i32 : i32 to vector<8x128xi32>
    %24 = arith.cmpi sle, %15, %23 : vector<8x128xi32>
    %25 = arith.andi %22, %24 : vector<8x128xi1>
    %c-1_i32 = arith.constant -1 : i32
    %c0_i32 = arith.constant 0 : i32
    %26 = vector.broadcast %c-1_i32 : i32 to vector<8x128xi32>
    %27 = vector.broadcast %c0_i32 : i32 to vector<8x128xi32>
    %28 = arith.select %25, %26, %27 : vector<8x128xi1>, vector<8x128xi32>
    %c1_i32_6 = arith.constant 1 : i32
    %29 = vector.broadcast %c1_i32_6 : i32 to vector<8x128xi32>
    %30 = arith.select %20, %29, %28 : vector<8x128xi1>, vector<8x128xi32>
    %c1_i32_7 = arith.constant 1 : i32
    %31 = vector.broadcast %c1_i32_7 : i32 to vector<8x128xi32>
    %32 = arith.cmpi sge, %15, %31 : vector<8x128xi32>
    %c3_i32_8 = arith.constant 3 : i32
    %33 = vector.broadcast %c3_i32_8 : i32 to vector<8x128xi32>
    %34 = arith.cmpi sle, %15, %33 : vector<8x128xi32>
    %35 = arith.andi %32, %34 : vector<8x128xi1>
    %c5_i32_9 = arith.constant 5 : i32
    %36 = vector.broadcast %c5_i32_9 : i32 to vector<8x128xi32>
    %37 = arith.cmpi sge, %15, %36 : vector<8x128xi32>
    %c7_i32_10 = arith.constant 7 : i32
    %38 = vector.broadcast %c7_i32_10 : i32 to vector<8x128xi32>
    %39 = arith.cmpi sle, %15, %38 : vector<8x128xi32>
    %40 = arith.andi %37, %39 : vector<8x128xi1>
    %c-1_i32_11 = arith.constant -1 : i32
    %c0_i32_12 = arith.constant 0 : i32
    %41 = vector.broadcast %c-1_i32_11 : i32 to vector<8x128xi32>
    %42 = vector.broadcast %c0_i32_12 : i32 to vector<8x128xi32>
    %43 = arith.select %40, %41, %42 : vector<8x128xi1>, vector<8x128xi32>
    %c1_i32_13 = arith.constant 1 : i32
    %44 = vector.broadcast %c1_i32_13 : i32 to vector<8x128xi32>
    %45 = arith.select %35, %44, %43 : vector<8x128xi1>, vector<8x128xi32>
    %46 = tpu.iota {dimensions = array<i32: 0>} : vector<8x128xi32>
    %c7_i32_14 = arith.constant 7 : i32
    %47 = tpu.dynamic_rotate %0 by %c7_i32_14 dim 0 : vector<8x128xf32>, i32 -> vector<8x128xf32>
    %c1_i32_15 = arith.constant 1 : i32
    %48 = tpu.dynamic_rotate %0 by %c1_i32_15 dim 0 : vector<8x128xf32>, i32 -> vector<8x128xf32>
    %c7_i32_16 = arith.constant 7 : i32
    %49 = vector.broadcast %c7_i32_16 : i32 to vector<8x128xi32>
    %50 = arith.cmpi eq, %46, %49 : vector<8x128xi32>
    %51 = vector.shape_cast %2 : vector<1x128xf32> to vector<1x128xf32>
    %52 = vector.broadcast %51 : vector<1x128xf32> to vector<8x128xf32>
    %53 = arith.select %50, %52, %47 : vector<8x128xi1>, vector<8x128xf32>
    %c0_i32_17 = arith.constant 0 : i32
    %54 = vector.broadcast %c0_i32_17 : i32 to vector<8x128xi32>
    %55 = arith.cmpi eq, %46, %54 : vector<8x128xi32>
    %56 = vector.shape_cast %3 : vector<1x128xf32> to vector<1x128xf32>
    %57 = vector.broadcast %56 : vector<1x128xf32> to vector<8x128xf32>
    %58 = arith.select %55, %57, %48 : vector<8x128xi1>, vector<8x128xf32>
    %c1_i32_18 = arith.constant 1 : i32
    %59 = vector.broadcast %c1_i32_18 : i32 to vector<8x128xi32>
    %60 = arith.cmpi eq, %30, %59 : vector<8x128xi32>
    %c-1_i32_19 = arith.constant -1 : i32
    %61 = vector.broadcast %c-1_i32_19 : i32 to vector<8x128xi32>
    %62 = arith.cmpi eq, %30, %61 : vector<8x128xi32>
    %63 = arith.select %62, %58, %0 : vector<8x128xi1>, vector<8x128xf32>
    %64 = arith.select %60, %53, %63 : vector<8x128xi1>, vector<8x128xf32>
    %c127_i32 = arith.constant 127 : i32
    %65 = tpu.dynamic_rotate %64 by %c127_i32 dim 1 : vector<8x128xf32>, i32 -> vector<8x128xf32>
    %c1_i32_20 = arith.constant 1 : i32
    %66 = tpu.dynamic_rotate %64 by %c1_i32_20 dim 1 : vector<8x128xf32>, i32 -> vector<8x128xf32>
    %c1_i32_21 = arith.constant 1 : i32
    %67 = vector.broadcast %c1_i32_21 : i32 to vector<8x128xi32>
    %68 = arith.cmpi eq, %45, %67 : vector<8x128xi32>
    %c-1_i32_22 = arith.constant -1 : i32
    %69 = vector.broadcast %c-1_i32_22 : i32 to vector<8x128xi32>
    %70 = arith.cmpi eq, %45, %69 : vector<8x128xi32>
    %71 = arith.select %70, %66, %64 : vector<8x128xi1>, vector<8x128xf32>
    %72 = arith.select %68, %65, %71 : vector<8x128xi1>, vector<8x128xf32>
    %c8_i32 = arith.constant 8 : i32
    %73 = arith.muli %arg0, %c8_i32 : i32
    %74 = vector.broadcast %73 : i32 to vector<8x128xi32>
    %75 = arith.addi %74, %46 : vector<8x128xi32>
    %76 = tpu.iota {dimensions = array<i32: 1>} : vector<8x128xi32>
    %77 = arith.addi %75, %30 : vector<8x128xi32>
    %78 = arith.addi %76, %45 : vector<8x128xi32>
    %c16_i32 = arith.constant 16 : i32
    %79 = vector.broadcast %c16_i32 : i32 to vector<8x128xi32>
    %80 = arith.cmpi sge, %77, %79 : vector<8x128xi32>
    %c0_i32_23 = arith.constant 0 : i32
    %81 = vector.broadcast %c0_i32_23 : i32 to vector<8x128xi32>
    %82 = arith.cmpi slt, %77, %81 : vector<8x128xi32>
    %83 = arith.ori %80, %82 : vector<8x128xi1>
    %c16_i32_24 = arith.constant 16 : i32
    %84 = vector.broadcast %c16_i32_24 : i32 to vector<8x128xi32>
    %85 = arith.cmpi sge, %78, %84 : vector<8x128xi32>
    %86 = arith.ori %83, %85 : vector<8x128xi1>
    %c0_i32_25 = arith.constant 0 : i32
    %87 = vector.broadcast %c0_i32_25 : i32 to vector<8x128xi32>
    %88 = arith.cmpi slt, %78, %87 : vector<8x128xi32>
    %89 = arith.ori %86, %88 : vector<8x128xi1>
    %90 = arith.subf %0, %72 : vector<8x128xf32>
    %91 = math.absf %90 : vector<8x128xf32>
    %cst_26 = arith.constant 6.28318548 : f32
    %92 = vector.broadcast %cst_26 : f32 to vector<8x128xf32>
    %93 = arith.subf %92, %91 : vector<8x128xf32>
    %94 = arith.minimumf %91, %93 : vector<8x128xf32>
    %cst_27 = arith.constant 0.785398185 : f32
    %95 = vector.broadcast %cst_27 : f32 to vector<8x128xf32>
    %96 = arith.cmpf ogt, %94, %95 : vector<8x128xf32>
    %97 = arith.ori %89, %96 : vector<8x128xi1>
    %c16_i32_28 = arith.constant 16 : i32
    %98 = vector.broadcast %c16_i32_28 : i32 to vector<8x128xi32>
    %99 = arith.muli %75, %98 : vector<8x128xi32>
    %100 = arith.addi %99, %76 : vector<8x128xi32>
    %c0_i32_29 = arith.constant 0 : i32
    %101 = vector.broadcast %c0_i32_29 : i32 to vector<8x128xi32>
    %102 = arith.subi %101, %100 : vector<8x128xi32>
    %c1_i32_30 = arith.constant 1 : i32
    %103 = vector.broadcast %c1_i32_30 : i32 to vector<8x128xi32>
    %104 = arith.subi %102, %103 : vector<8x128xi32>
    %c16_i32_31 = arith.constant 16 : i32
    %105 = vector.broadcast %c16_i32_31 : i32 to vector<8x128xi32>
    %106 = arith.muli %77, %105 : vector<8x128xi32>
    %107 = arith.addi %106, %78 : vector<8x128xi32>
    %108 = arith.select %97, %104, %107 : vector<8x128xi1>, vector<8x128xi32>
    %c0_32 = arith.constant 0 : index
    %c0_33 = arith.constant 0 : index
    %109 = vector.load %arg3[%c0_32, %c0_33] : memref<8x128xi32, #tpu.memory_space<vmem>>, vector<8x128xi32>
    tpu.vector_store %arg3[%c0_32, %c0_33], %108 {strides = array<i32>} : memref<8x128xi32, #tpu.memory_space<vmem>>, vector<8x128xi32>,
    return
  }
  func.func @transform_0(%arg0: i32) -> (i32, i32) {
    %c0_i32 = arith.constant 0 : i32
    %c0_i32_0 = arith.constant 0 : i32
    return %arg0, %c0_i32 : i32, i32
  }
  func.func @transform_1(%arg0: i32) -> (i32, i32) {
    %c0_i32 = arith.constant 0 : i32
    %c0_i32_0 = arith.constant 0 : i32
    return %arg0, %c0_i32 : i32, i32
  }
  func.func @transform_2(%arg0: i32) -> (i32, i32) {
    %c0_i32 = arith.constant 0 : i32
    %c0_i32_0 = arith.constant 0 : i32
    return %arg0, %c0_i32 : i32, i32
  }
}

</mosaic_0001>

<llo_original>
// kernel: tpu_custom_call.1
$region0: #{tpu_custom_call.1}
  #allocation0 [shape = 'u32[]', space=smem, size = 0x4, offset = 0x4, fixed_abs, tag = 'smem constant byte address 0x4 - core index']
  #allocation1 [shape = 'u32[72,128]{1,0:T(1,128)}', space=vmem, size = 0x9000, scoped, tag = 'internal scratch']
  %s0 = inlined_call_operand.hbm [shape: f32[16,128], index: 0, kind: input, shape index: {}]
  %s1 = inlined_call_operand.hbm [shape: f32[16,128], index: 1, kind: input, shape index: {}]
  %s2 = inlined_call_operand.hbm [shape: s32[16,128], index: 2, kind: output, shape index: {}]
  %s3 = sld [smem:[#allocation0]]
  $region49: #{tpu_custom_call.1} parent=0
    _
  %s5 = ssub.s32 1, %s3
  %s6 = scalar_select 0, %s5, %s3
  $region1: #{tpu_custom_call.1} parent=0
    #allocation2 [shape = 'u8[8192]{0}', space=vmem, size = 0x2000, scoped, tag = 'input window, operand 0']
    #allocation3 [shape = 's32[2]{0}', space=sflag, size = 0x8, scoped, tag = 'scoped memory for tpu_custom_call.1']
    #allocation4 [shape = 's32[2]{0}', space=sflag, size = 0x8, scoped, tag = 'scoped memory for tpu_custom_call.1']
    #allocation5 [shape = 'u8[8192]{0}', space=vmem, size = 0x2000, scoped, tag = 'input window, operand 1']
    #allocation6 [shape = 's32[2]{0}', space=sflag, size = 0x8, scoped, tag = 'scoped memory for tpu_custom_call.1']
    #allocation7 [shape = 'u8[8192]{0}', space=vmem, size = 0x2000, scoped, tag = 'output window, operand 0']
    %7 = vsyncpa [#allocation3], 0
    %s8 = scalar_lea.sflag [#allocation3], 1
    %9 = vsyncpa %s8, 0
    %10 = vsyncpa [#allocation6], 0
    %s11 = scalar_lea.sflag [#allocation6], 1
    %12 = vsyncpa %s11, 0
    %13 = vsyncpa [#allocation4], 0
    %s14 = scalar_lea.sflag [#allocation4], 1
    %15 = vsyncpa %s14, 0
    loop: start=0, step=1, limit=4
    $region2: #{tpu_custom_call.1} parent=1 // loop_pre_header
      _
    $region3: #{tpu_custom_call.1} parent=1 // loop_header
      %s17 = sphi 0, %s21
      %p18 = scmp.ge.s32.totalorder %s17, 4
      %s27 = sphi 0, %s29
      %s30 = sphi 0, %s27
      %s31 = sphi 0, %s30
      %s47 = sphi 0, %s31
      %s53 = sphi 0, %s55
      %s56 = sphi 0, %s53
      %s57 = sphi 0, %s56
      %s73 = sphi 0, %s57
      %s79 = sphi 0, %s81
      %s82 = sphi 0, %s79
      %s83 = sphi 0, %s82
      %s99 = sphi 0, %s83
    $region4: #{tpu_custom_call.1} parent=1 // loop_header_branch
      %20 = sbr.rel (%p18) target = $region8
    $region5: #{tpu_custom_call.1} parent=1 // loop_body
      %s22 = ssub.s32 %s17, 1
      %s23 = ssub.s32 %s17, 2
      %s24 = sadd.s32 %s17, 1
      %s25 = ssub.s32 %s17, %s24
      %p26 = scmp.eq.s32.totalorder %s25, 0
      %s28 = sadd.s32 %s27, 1
      %s29 = scalar_select %p26, %s27, %s28
      %p32 = pneg %p26
      %p33 = scmp.eq.s32.totalorder %s17, 1
      %p34 = por %p32, %p33
      %p35 = scmp.ne.s32.totalorder %s27, %s30
      %p36 = scmp.eq.s32.totalorder %s17, 0
      %p37 = por %p35, %p36
      %p38 = scmp.ne.s32.totalorder %s27, %s30
      %p39 = scmp.eq.s32.totalorder %s22, 1
      %p40 = por %p38, %p39
      %p41 = scmp.ne.s32.totalorder %s30, %s31
      %p42 = scmp.eq.s32.totalorder %s22, 0
      %p43 = por %p41, %p42
      %p44 = scmp.ne.s32.totalorder %s30, %s31
      %p45 = scmp.eq.s32.totalorder %s23, 1
      %p46 = por %p44, %p45
      %p48 = scmp.ne.s32.totalorder %s31, %s47
      %p49 = scmp.eq.s32.totalorder %s23, 0
      %p50 = por %p48, %p49
      %s51 = ssub.s32 %s17, %s24
      %p52 = scmp.eq.s32.totalorder %s51, 0
      %s54 = sadd.s32 %s53, 1
      %s55 = scalar_select %p52, %s53, %s54
      %p58 = pneg %p52
      %p59 = scmp.eq.s32.totalorder %s17, 1
      %p60 = por %p58, %p59
      %p61 = scmp.ne.s32.totalorder %s53, %s56
      %p62 = scmp.eq.s32.totalorder %s17, 0
      %p63 = por %p61, %p62
      %p64 = scmp.ne.s32.totalorder %s53, %s56
      %p65 = scmp.eq.s32.totalorder %s22, 1
      %p66 = por %p64, %p65
      %p67 = scmp.ne.s32.totalorder %s56, %s57
      %p68 = scmp.eq.s32.totalorder %s22, 0
      %p69 = por %p67, %p68
      %p70 = scmp.ne.s32.totalorder %s56, %s57
      %p71 = scmp.eq.s32.totalorder %s23, 1
      %p72 = por %p70, %p71
      %p74 = scmp.ne.s32.totalorder %s57, %s73
      %p75 = scmp.eq.s32.totalorder %s23, 0
      %p76 = por %p74, %p75
      %s77 = ssub.s32 %s17, %s24
      %p78 = scmp.eq.s32.totalorder %s77, 0
      %s80 = sadd.s32 %s79, 1
      %s81 = scalar_select %p78, %s79, %s80
      %p84 = pneg %p78
      %p85 = scmp.eq.s32.totalorder %s17, 1
      %p86 = por %p84, %p85
      %p87 = scmp.ne.s32.totalorder %s79, %s82
      %p88 = scmp.eq.s32.totalorder %s17, 0
      %p89 = por %p87, %p88
      %p90 = scmp.ne.s32.totalorder %s79, %s82
      %p91 = scmp.eq.s32.totalorder %s22, 1
      %p92 = por %p90, %p91
      %p93 = scmp.ne.s32.totalorder %s82, %s83
      %p94 = scmp.eq.s32.totalorder %s22, 0
      %p95 = por %p93, %p94
      %p96 = scmp.ne.s32.totalorder %s82, %s83
      %p97 = scmp.eq.s32.totalorder %s23, 1
      %p98 = por %p96, %p97
      %p100 = scmp.ne.s32.totalorder %s83, %s99
      %p101 = scmp.eq.s32.totalorder %s23, 0
      %p102 = por %p100, %p101
      %p103 = scmp.le.s32.totalorder 1, %s17
      %p104 = scmp.lt.s32.totalorder %s17, 3
      %p105 = pnand %p103, %p104
      %p106 = pneg %p105
      // Predicated region
      $region9: #{tpu_custom_call.1} parent=5 // pred_check
        _
      $region10: #{tpu_custom_call.1} parent=5 // pred_check_branch
        %108 = sbr.rel (%p105) target = $region12
      $region11: #{tpu_custom_call.1} parent=5 // pred_region
        %s109 = ssub.s32 %s17, 1
      $region12: #{tpu_custom_call.1} parent=5 // pred_fallthru
        _
      %p110 = scmp.lt.s32.totalorder %s17, 2
      // Predicated region
      $region13: #{tpu_custom_call.1} parent=5 // pred_check
        %p111 = pneg %p110
      $region14: #{tpu_custom_call.1} parent=5 // pred_check_branch
        %113 = sbr.rel (%p111) target = $region16
      $region15: #{tpu_custom_call.1} parent=5 // pred_region
        // Predicated region
        $region17: #{tpu_custom_call.1} parent=15 // pred_check
          %p114 = pneg %p37
        $region18: #{tpu_custom_call.1} parent=15 // pred_check_branch
          %116 = sbr.rel (%p114) target = $region20
        $region19: #{tpu_custom_call.1} parent=15 // pred_region
          %s117 = sand.u32 %s27, 1
          %s118 = scalar_lea.sflag [#allocation3], %s117
          %s119 = sand.u32 %s27, 1
          %s120 = smul.addr %s119, 8
          %s121 = scalar_lea.vmem [#allocation2], %s120
          %123 = vsyncadd %s118, 0
          %s124 = smul.addr %s17, 8
          %s125 = scalar_lea.hbm %s0, %s124
          %s127 = sshll.u32 %s125, 4
          %s128 = int_to_ptr.hbm [resolvable:$true] %s127
          %s129 = sshll.u32 %s121, 4
          %s130 = int_to_ptr.vmem [resolvable:$true] %s129
          %132 = dma.hbm_to_vmem [thread:$0]  %s128, 128, %s130, %s118
        $region20: #{tpu_custom_call.1} parent=15 // pred_fallthru
          _
        // Predicated region
        $region21: #{tpu_custom_call.1} parent=15 // pred_check
          %p133 = pneg %p63
        $region22: #{tpu_custom_call.1} parent=15 // pred_check_branch
          %135 = sbr.rel (%p133) target = $region24
        $region23: #{tpu_custom_call.1} parent=15 // pred_region
          %s136 = sand.u32 %s53, 1
          %s137 = scalar_lea.sflag [#allocation6], %s136
          %s138 = sand.u32 %s53, 1
          %s139 = smul.addr %s138, 8
          %s140 = scalar_lea.vmem [#allocation5], %s139
          %142 = vsyncadd %s137, 0
          %s143 = smul.addr %s17, 8
          %s144 = scalar_lea.hbm %s1, %s143
          %s146 = sshll.u32 %s144, 4
          %s147 = int_to_ptr.hbm [resolvable:$true] %s146
          %s148 = sshll.u32 %s140, 4
          %s149 = int_to_ptr.vmem [resolvable:$true] %s148
          %151 = dma.hbm_to_vmem [thread:$0]  %s147, 128, %s149, %s137
        $region24: #{tpu_custom_call.1} parent=15 // pred_fallthru
          _
      $region16: #{tpu_custom_call.1} parent=5 // pred_fallthru
        _
      %p152 = scmp.le.s32.totalorder 1, %s17
      %p153 = scmp.lt.s32.totalorder %s17, 3
      %p154 = pnand %p152, %p153
      %p155 = pneg %p154
      // Predicated region
      $region25: #{tpu_custom_call.1} parent=5 // pred_check
        _
      $region26: #{tpu_custom_call.1} parent=5 // pred_check_branch
        %157 = sbr.rel (%p154) target = $region28
      $region27: #{tpu_custom_call.1} parent=5 // pred_region
        %s158 = ssub.s32 %s17, 1
        %s159 = sand.u32 %s30, 1
        %s160 = scalar_lea.sflag [#allocation3], %s159
        %s161 = sand.u32 %s30, 1
        %s162 = smul.addr %s161, 8
        %s163 = scalar_lea.vmem [#allocation2], %s162
        // Predicated region
        $region29: #{tpu_custom_call.1} parent=27 // pred_check
          %p164 = pneg %p43
        $region30: #{tpu_custom_call.1} parent=27 // pred_check_branch
          %166 = sbr.rel (%p164) target = $region32
        $region31: #{tpu_custom_call.1} parent=27 // pred_region
          %168 = dma.done %s160, 128
        $region32: #{tpu_custom_call.1} parent=27 // pred_fallthru
          _
        %s169 = sand.u32 %s56, 1
        %s170 = scalar_lea.sflag [#allocation6], %s169
        %s171 = sand.u32 %s56, 1
        %s172 = smul.addr %s171, 8
        %s173 = scalar_lea.vmem [#allocation5], %s172
        // Predicated region
        $region33: #{tpu_custom_call.1} parent=27 // pred_check
          %p174 = pneg %p69
        $region34: #{tpu_custom_call.1} parent=27 // pred_check_branch
          %176 = sbr.rel (%p174) target = $region36
        $region35: #{tpu_custom_call.1} parent=27 // pred_region
          %178 = dma.done %s170, 128
        $region36: #{tpu_custom_call.1} parent=27 // pred_fallthru
          _
        %s179 = sand.u32 %s30, 1
        %s180 = scalar_lea.sflag [#allocation3], %s179
        %s181 = sand.u32 %s30, 1
        %s182 = smul.addr %s181, 8
        %s183 = scalar_lea.vmem [#allocation2], %s182
        %p184 = pneg %p43
        %p185 = pneg %p40
        %s186 = sand.u32 %s56, 1
        %s187 = scalar_lea.sflag [#allocation6], %s186
        %s188 = sand.u32 %s56, 1
        %s189 = smul.addr %s188, 8
        %s190 = scalar_lea.vmem [#allocation5], %s189
        %p191 = pneg %p69
        %p192 = pneg %p66
        %p193 = pneg %p95
        %p194 = pneg %p92
        %s195 = sand.u32 %s82, 1
        %s196 = scalar_lea.sflag [#allocation4], %s195
        %s197 = sand.u32 %s82, 1
        %s198 = smul.addr %s197, 8
        %s199 = scalar_lea.vmem [#allocation7], %s198
        %v200 = vld [vmem:[%s163] sm:$0xff]
        %v201 = vld [vmem:[%s173] sm:$0xff]
        %v202 = vadd.f32 %v200, 0.3926991
        %v203 = vmul.f32 %v202, 1.2732395
        %v204 = vround.ne.pseudo %v203
        %v205 = vmul.f32 %v204, 0.125
        %v206 = vfloor.f32 %v205
        %v207 = vmul.f32 %v206, 8.0
        %v208 = vsub.f32 %v204, %v207
        %v209 = vcvt.f32.s32.to.zero.pseudo %v208
        %vm210 = vcmp.le.s32.totalorder %v209, 1
        %vm211 = vcmp.eq.s32.totalorder %v209, 7
        %vm212 = vmor %vm210, %vm211
        %vm213 = vcmp.ge.s32.totalorder %v209, 3
        %vm214 = vcmp.le.s32.totalorder %v209, 5
        %vm215 = vmand %vm213, %vm214
        %v216 = vsel %vm215, 4294967295, 0
        %v217 = vsel %vm212, 1, %v216
        %vm218 = vcmp.ge.s32.totalorder %v209, 1
        %vm219 = vcmp.le.s32.totalorder %v209, 3
        %vm220 = vmand %vm218, %vm219
        %vm221 = vcmp.ge.s32.totalorder %v209, 5
        %vm222 = vcmp.le.s32.totalorder %v209, 7
        %vm223 = vmand %vm221, %vm222
        %v224 = vsel %vm223, 4294967295, 0
        %v225 = vsel %vm220, 1, %v224
        %v226 = vlaneseq
        %v227 = vshrl.u32 %v226, 7
        %v228 = vrot.slane %v200, 1
        %v229 = vrot.slane %v200, 7
        %vm230 = vcmp.eq.s32.totalorder %v227, 7
        %v231 = vperm.slane %v201, 0
        %v232 = vsel %vm230, %v231, %v228
        %vm233 = vcmp.eq.s32.totalorder %v227, 0
        %v234 = vperm.slane %v201, 1
        %v235 = vsel %vm233, %v234, %v229
        %vm236 = vcmp.eq.s32.totalorder %v217, 1
        %vm237 = vcmp.eq.s32.totalorder %v217, 4294967295
        %v238 = vsel %vm237, %v235, %v200
        %v239 = vsel %vm236, %v232, %v238
        %240 = vrot.lane.b32.xlu0 %v239, 127
        %v241 = vpop.permute.xlu0 %240
        %242 = vrot.lane.b32.xlu0 %v239, 1
        %v243 = vpop.permute.xlu0 %242
        %vm244 = vcmp.eq.s32.totalorder %v225, 1
        %vm245 = vcmp.eq.s32.totalorder %v225, 4294967295
        %v246 = vsel %vm245, %v243, %v239
        %v247 = vsel %vm244, %v241, %v246
        %s248 = smul.u32 %s22, 8
        %v249 = vstv %s248
        %v250 = vadd.s32 %v249, %v227
        %v251 = vlaneseq
        %v252 = vand.u32 %v251, 127
        %v253 = vadd.s32 %v250, %v217
        %v254 = vadd.s32 %v252, %v225
        %vm255 = vcmp.ge.s32.totalorder %v253, 16
        %vm256 = vcmp.lt.s32.totalorder %v253, 0
        %vm257 = vmor %vm255, %vm256
        %vm258 = vcmp.ge.s32.totalorder %v254, 16
        %vm259 = vmor %vm257, %vm258
        %vm260 = vcmp.lt.s32.totalorder %v254, 0
        %vm261 = vmor %vm259, %vm260
        %v262 = vsub.f32 %v200, %v247
        %v263 = vand.u32 2147483647, %v262
        %v264 = vsub.f32 6.2831855, %v263
        %v265 = vmin.f32 %v263, %v264
        %vm266 = vcmp.gt.f32.partialorder %v265, 0.7853982
        %vm267 = vmor %vm261, %vm266
        %v268 = vmul.u32 %v250, 16
        %v269 = vadd.s32 %v268, %v252
        %v270 = vsub.s32 0, %v269
        %v271 = vsub.s32 %v270, 1
        %v272 = vmul.u32 %v253, 16
        %v273 = vadd.s32 %v272, %v254
        %v274 = vsel %vm267, %v271, %v273
        %275 = vst [vmem:[%s199] sm:$0xff] %v274
        %s276 = sand.u32 %s82, 1
        %s277 = scalar_lea.sflag [#allocation4], %s276
        %s278 = sand.u32 %s82, 1
        %s279 = smul.addr %s278, 8
        %s280 = scalar_lea.vmem [#allocation7], %s279
        // Predicated region
        $region37: #{tpu_custom_call.1} parent=27 // pred_check
          %p281 = pneg %p92
        $region38: #{tpu_custom_call.1} parent=27 // pred_check_branch
          %283 = sbr.rel (%p281) target = $region40
        $region39: #{tpu_custom_call.1} parent=27 // pred_region
          %285 = vsyncadd %s277, 0
          %s286 = smul.addr %s22, 8
          %s287 = scalar_lea.hbm %s2, %s286
          %s289 = sshll.u32 %s280, 4
          %s290 = int_to_ptr.vmem [resolvable:$true] %s289
          %s291 = sshll.u32 %s287, 4
          %s292 = int_to_ptr.hbm [resolvable:$true] %s291
          %294 = dma.vmem_to_hbm [thread:$0]  %s290, 128, %s292, %s277
        $region40: #{tpu_custom_call.1} parent=27 // pred_fallthru
          _
      $region28: #{tpu_custom_call.1} parent=5 // pred_fallthru
        _
      %p295 = scmp.le.s32.totalorder 2, %s17
      // Predicated region
      $region41: #{tpu_custom_call.1} parent=5 // pred_check
        %p296 = pneg %p295
      $region42: #{tpu_custom_call.1} parent=5 // pred_check_branch
        %298 = sbr.rel (%p296) target = $region44
      $region43: #{tpu_custom_call.1} parent=5 // pred_region
        %s299 = ssub.s32 %s17, 2
        // Predicated region
        $region45: #{tpu_custom_call.1} parent=43 // pred_check
          %p300 = pneg %p98
        $region46: #{tpu_custom_call.1} parent=43 // pred_check_branch
          %302 = sbr.rel (%p300) target = $region48
        $region47: #{tpu_custom_call.1} parent=43 // pred_region
          %s303 = sand.u32 %s83, 1
          %s304 = scalar_lea.sflag [#allocation4], %s303
          %s305 = sand.u32 %s83, 1
          %s306 = smul.addr %s305, 8
          %s307 = scalar_lea.vmem [#allocation7], %s306
          %309 = dma.done %s304, 128
        $region48: #{tpu_custom_call.1} parent=43 // pred_fallthru
          _
      $region44: #{tpu_custom_call.1} parent=5 // pred_fallthru
        _
    $region6: #{tpu_custom_call.1} parent=1 // loop_footer
      %s21 = sadd.s32 1, %s17
    $region7: #{tpu_custom_call.1} parent=1 // loop_footer_branch
      %16 = sbr.rel target = $region3
    $region8: #{tpu_custom_call.1} parent=1 // loop_exit
      _
    %310 = vsyncpa [#allocation3], 1
    %s311 = scalar_lea.sflag [#allocation3], 1
    %312 = vsyncpa %s311, 1
    %313 = vsyncpa [#allocation6], 1
    %s314 = scalar_lea.sflag [#allocation6], 1
    %315 = vsyncpa %s314, 1
    %316 = vsyncpa [#allocation4], 1
    %s317 = scalar_lea.sflag [#allocation4], 1
    %318 = vsyncpa %s317, 1

</llo_original>
